<compile_context>
chip_gen: v7x
topology: tpu7x:2x2x1
jax: 0.10.0
libtpu: 0.0.40
codegen_flags: <defaults>
</compile_context>

<pallas_src>
import jax
import jax.numpy as jnp
from jax.experimental import pallas as pl
from jax.experimental.pallas import tpu as pltpu

HIDDEN_DIM = 256
OUTPUT_DIM = 3
RANK = 16


def _round_up(x, m):
    return (x + m - 1) // m * m


def _cdiv(a, b):
    return -(-a // b)


def _pick_tile_b(B, requested):
    """Choose the batch tile.

    Small batches -> a single block exactly equal to B (always a legal block
    shape since it matches the full array dim).  Large batches -> at least two
    grid steps, even count when possible (v7x megacore balance), each step a
    multiple of 8 sublanes and at most `requested` rows.
    """
    if B <= 1024:
        return B
    tile = min(requested, _round_up(_cdiv(B, 2), 8))
    steps = _cdiv(B, tile)
    if steps > 1 and steps % 2 == 1:
        steps += 1
        tile = _round_up(_cdiv(B, steps), 8)
    return tile


def _lmf_kernel(tx_ref, ax_ref, vx_ref,
                w1_ref, w2_ref, w3_ref,
                b1_ref, b2_ref, b3_ref,
                sel_ref, bias_ref,
                out_ref):
    # Activations arrive as f32 (exactly what the DMA read from HBM); the bf16
    # cast happens here on the VPU, hidden under the DMA.  Per-modality
    # low-rank projection on the MXU, K = 256, f32 accumulation; the factor's
    # bias row (what the ones column used to hit) is added after the dot.
    f_t = jnp.dot(tx_ref[...].astype(jnp.bfloat16), w1_ref[...],
                  preferred_element_type=jnp.float32) + b1_ref[...]
    f_a = jnp.dot(ax_ref[...].astype(jnp.bfloat16), w2_ref[...],
                  preferred_element_type=jnp.float32) + b2_ref[...]
    f_v = jnp.dot(vx_ref[...].astype(jnp.bfloat16), w3_ref[...],
                  preferred_element_type=jnp.float32) + b3_ref[...]

    # Low-rank multimodal fusion: elementwise product across modalities (VPU, f32).
    zy = f_t * f_a * f_v                                   # (TILE_B, R*O)

    # Rank reduction via the f32 weighted-selection matrix (fusion_weights are
    # folded into sel), plus fusion bias broadcast over the batch tile.
    out_ref[...] = (
        jnp.dot(zy, sel_ref[...], preferred_element_type=jnp.float32)
        + bias_ref[...]
    )


def lmf_forward(text_x, audio_x, video_x, params, *, tile_b=4096):
    """JAX/Pallas equivalent of LMF.forward with all three modalities present."""
    B = text_x.shape[0]
    H, O, R = HIDDEN_DIM, OUTPUT_DIM, RANK

    # Factor (R, H+1, O) -> (H+1, R*O); column index = r*O + o.
    def reshape_factor(f):
        return jnp.transpose(f, (1, 0, 2)).reshape(H + 1, R * O)

    f1 = reshape_factor(params["factor_1"]).astype(jnp.float32)
    f2 = reshape_factor(params["factor_2"]).astype(jnp.float32)
    f3 = reshape_factor(params["factor_3"]).astype(jnp.float32)

    # Split off the bias row (row 0, paired with the implicit ones column) so
    # the MXU contraction stays at K = 256 exactly.  Weight part -> bf16
    # (tiny VMEM residents), bias row stays f32 (adds into the f32 accumulator).
    def split(f):
        return f[1:, :].astype(jnp.bfloat16), f[0:1, :].astype(jnp.float32)

    w1, b1 = split(f1)
    w2, b2 = split(f2)
    w3, b3 = split(f3)

    # Fold fusion_weights into the f32 selection matrix: sel[r*O+o, o] = w[r].
    # (Keeps the rank weighting in f32; all three factor matrices stay uniform.)
    w = params["fusion_weights"].reshape(R).astype(jnp.float32)
    sel = jnp.kron(w.reshape(R, 1), jnp.eye(O, dtype=jnp.float32))     # (R*O, O)
    bias = params["fusion_bias"].astype(jnp.float32).reshape(1, O)

    # Activations stay f32 — no wrapper-side cast or pad pass over HBM.
    tx = text_x.astype(jnp.float32)
    ax = audio_x.astype(jnp.float32)
    vx = video_x.astype(jnp.float32)

    tile_b = _pick_tile_b(B, tile_b)
    grid = (pl.cdiv(B, tile_b),)      # ragged last block handled by Pallas

    act_spec = pl.BlockSpec((tile_b, H), lambda i: (i, 0))
    w_spec = pl.BlockSpec((H, R * O), lambda i: (0, 0))       # VMEM resident
    b_spec = pl.BlockSpec((1, R * O), lambda i: (0, 0))       # VMEM resident
    sel_spec = pl.BlockSpec((R * O, O), lambda i: (0, 0))     # VMEM resident
    bias_spec = pl.BlockSpec((1, O), lambda i: (0, 0))        # VMEM resident
    out_spec = pl.BlockSpec((tile_b, O), lambda i: (i, 0))

    # Right-size the VMEM limit: double-buffered f32 activation tiles + output
    # tile (lane-padded) + tiny residents, plus headroom.  Clamped so it never
    # exceeds v7x's 64 MiB physical VMEM and never drops below v5e's 16 MiB
    # default scoped limit.
    resident_bytes = 2 * (3 * H * (R * O) * 2       # bf16 factor matrices
                          + 3 * (R * O) * 4         # f32 bias rows
                          + (R * O) * O * 4         # selection matrix
                          + 128 * 4)                # fusion bias (lane-padded)
    act_bytes = 2 * 3 * tile_b * H * 4              # double-buffered f32 tiles
    out_bytes = 2 * tile_b * 128 * 4                # double-buffered out tile
    vmem_limit = int(1.25 * (resident_bytes + act_bytes + out_bytes)) + (2 << 20)
    vmem_limit = max(16 << 20, min(vmem_limit, 56 << 20))

    flops = (2 * B * H * (R * O) * 3       # three projections
             + 2 * B * (R * O) * O         # rank reduction
             + 5 * B * (R * O))            # bias adds + modality product
    bytes_accessed = (3 * B * H * 4        # f32 activations
                      + 3 * H * (R * O) * 2    # bf16 factor matrices
                      + 3 * (R * O) * 4        # f32 factor bias rows
                      + (R * O) * O * 4        # selection matrix
                      + O * 4                  # fusion bias
                      + B * O * 4)             # f32 output

    out = pl.pallas_call(
        _lmf_kernel,
        out_shape=jax.ShapeDtypeStruct((B, O), jnp.float32),
        grid=grid,
        in_specs=[act_spec, act_spec, act_spec,
                  w_spec, w_spec, w_spec,
                  b_spec, b_spec, b_spec,
                  sel_spec, bias_spec],
        out_specs=out_spec,
        compiler_params=pltpu.CompilerParams(
            dimension_semantics=("parallel",),      # shards batch steps across TCs
            vmem_limit_bytes=vmem_limit,
        ),
        cost_estimate=pl.CostEstimate(
            flops=flops, transcendentals=0, bytes_accessed=bytes_accessed),
    )(tx, ax, vx, w1, w2, w3, b1, b2, b3, sel, bias)

    return out


def init_params(key):
    """Deterministic parameter init mirroring the shapes in LMF.__init__."""
    k1, k2, k3, k4 = jax.random.split(key, 4)

    def xavier_normal(k, shape):
        # PyTorch xavier_normal_ fan computation for >2-D tensors:
        # fan_in = shape[1] * prod(shape[2:]), fan_out = shape[0] * prod(shape[2:])
        rf = 1
        for d in shape[2:]:
            rf *= d
        fan_in = shape[1] * rf
        fan_out = shape[0] * rf
        std = (2.0 / (fan_in + fan_out)) ** 0.5
        return std * jax.random.normal(k, shape, dtype=jnp.float32)

    return {
        "factor_1": xavier_normal(k1, (RANK, HIDDEN_DIM + 1, OUTPUT_DIM)),
        "factor_2": xavier_normal(k2, (RANK, HIDDEN_DIM + 1, OUTPUT_DIM)),
        "factor_3": xavier_normal(k3, (RANK, HIDDEN_DIM + 1, OUTPUT_DIM)),
        "fusion_weights": xavier_normal(k4, (1, RANK)),
        "fusion_bias": jnp.zeros((1, OUTPUT_DIM), dtype=jnp.float32),
    }


def lmf_reference(text_x, audio_x, video_x, params):
    """Pure-JAX f32 reference matching the PyTorch forward exactly."""
    B = text_x.shape[0]
    ones = jnp.ones((B, 1), dtype=jnp.float32)
    th = jnp.concatenate([ones, text_x], axis=1)
    ah = jnp.concatenate([ones, audio_x], axis=1)
    vh = jnp.concatenate([ones, video_x], axis=1)
    ft = jnp.einsum("bh,rho->rbo", th, params["factor_1"])
    fa = jnp.einsum("bh,rho->rbo", ah, params["factor_2"])
    fv = jnp.einsum("bh,rho->rbo", vh, params["factor_3"])
    zy = fa * fv * ft                                              # (R, B, O)
    out = jnp.einsum("r,rbo->bo", params["fusion_weights"][0], zy) + params["fusion_bias"]
    return out.reshape(-1, OUTPUT_DIM)


if __name__ == "__main__":
    key = jax.random.PRNGKey(0)
    kp, kt, ka, kv = jax.random.split(key, 4)
    params = init_params(kp)

    # Primary small-shape check (single exact block).
    B = 8
    text_x = jax.random.normal(kt, (B, HIDDEN_DIM), dtype=jnp.float32)
    audio_x = jax.random.normal(ka, (B, HIDDEN_DIM), dtype=jnp.float32)
    video_x = jax.random.normal(kv, (B, HIDDEN_DIM), dtype=jnp.float32)

    out = jax.block_until_ready(lmf_forward(text_x, audio_x, video_x, params))
    ref = lmf_reference(text_x, audio_x, video_x, params)
    assert out.shape == (B, OUTPUT_DIM), out.shape
    # bf16 activations/factors (f32 accumulation, f32 rank weighting).
    assert jnp.allclose(out, ref, atol=5e-2, rtol=5e-2), (out, ref)

    # Ragged-batch check: exercises the 2-step grid and the masked partial
    # last block (no wrapper-side padding).
    B2 = 1300
    k2t, k2a, k2v = jax.random.split(jax.random.PRNGKey(1), 3)
    tx2 = jax.random.normal(k2t, (B2, HIDDEN_DIM), dtype=jnp.float32)
    ax2 = jax.random.normal(k2a, (B2, HIDDEN_DIM), dtype=jnp.float32)
    vx2 = jax.random.normal(k2v, (B2, HIDDEN_DIM), dtype=jnp.float32)
    out2 = jax.block_until_ready(lmf_forward(tx2, ax2, vx2, params))
    ref2 = lmf_reference(tx2, ax2, vx2, params)
    assert out2.shape == (B2, OUTPUT_DIM), out2.shape
    assert jnp.allclose(out2, ref2, atol=5e-2, rtol=5e-2)

    print("KERNEL_OK")
</pallas_src>

<mosaic_0001>
module attributes {stable_mosaic.version = 11 : i64} {
  func.func @_lmf_kernel(%arg0: i32, %arg1: memref<8x256xf32, #tpu.memory_space<vmem>>, %arg2: memref<8x256xf32, #tpu.memory_space<vmem>>, %arg3: memref<8x256xf32, #tpu.memory_space<vmem>>, %arg4: memref<256x48xbf16, #tpu.memory_space<vmem>>, %arg5: memref<256x48xbf16, #tpu.memory_space<vmem>>, %arg6: memref<256x48xbf16, #tpu.memory_space<vmem>>, %arg7: memref<1x48xf32, #tpu.memory_space<vmem>>, %arg8: memref<1x48xf32, #tpu.memory_space<vmem>>, %arg9: memref<1x48xf32, #tpu.memory_space<vmem>>, %arg10: memref<48x3xf32, #tpu.memory_space<vmem>>, %arg11: memref<1x3xf32, #tpu.memory_space<vmem>>, %arg12: memref<8x3xf32, #tpu.memory_space<vmem>>) attributes {dimension_semantics = [#tpu.dimension_semantics<parallel>], iteration_bounds = array<i64: 1>, scalar_prefetch = 0 : i64, scratch_operands = 0 : i64, tpu.core_type = #tpu.core_type<tc>, window_params = [{transform_indices = @transform_0, window_bounds = array<i64: 8, 256>}, {transform_indices = @transform_1, window_bounds = array<i64: 8, 256>}, {transform_indices = @transform_2, window_bounds = array<i64: 8, 256>}, {pipeline_mode = #tpu.pipeline_mode<synchronous>, transform_indices = @transform_3, window_bounds = array<i64: 256, 48>}, {pipeline_mode = #tpu.pipeline_mode<synchronous>, transform_indices = @transform_4, window_bounds = array<i64: 256, 48>}, {pipeline_mode = #tpu.pipeline_mode<synchronous>, transform_indices = @transform_5, window_bounds = array<i64: 256, 48>}, {pipeline_mode = #tpu.pipeline_mode<synchronous>, transform_indices = @transform_6, window_bounds = array<i64: 1, 48>}, {pipeline_mode = #tpu.pipeline_mode<synchronous>, transform_indices = @transform_7, window_bounds = array<i64: 1, 48>}, {pipeline_mode = #tpu.pipeline_mode<synchronous>, transform_indices = @transform_8, window_bounds = array<i64: 1, 48>}, {pipeline_mode = #tpu.pipeline_mode<synchronous>, transform_indices = @transform_9, window_bounds = array<i64: 48, 3>}, {pipeline_mode = #tpu.pipeline_mode<synchronous>, transform_indices = @transform_10, window_bounds = array<i64: 1, 3>}, {transform_indices = @transform_11, window_bounds = array<i64: 8, 3>}]} {
    %c0 = arith.constant 0 : index
    %c0_0 = arith.constant 0 : index
    %0 = vector.load %arg1[%c0, %c0_0] : memref<8x256xf32, #tpu.memory_space<vmem>>, vector<8x256xf32>
    %1 = arith.truncf %0 : vector<8x256xf32> to vector<8x256xbf16>
    %c0_1 = arith.constant 0 : index
    %c0_2 = arith.constant 0 : index
    %2 = vector.load %arg4[%c0_1, %c0_2] : memref<256x48xbf16, #tpu.memory_space<vmem>>, vector<256x48xbf16>
    %cst = arith.constant dense<0.000000e+00> : vector<8x48xf32>
    %3 = tpu.matmul %1, %2, %cst {dimension_numbers = #tpu.dot_dimension_numbers<[1], [0], [0], [1], [0, 0, 1, 1], [], []>} : vector<8x256xbf16>, vector<256x48xbf16>, vector<8x48xf32> -> vector<8x48xf32>
    %c0_3 = arith.constant 0 : index
    %c0_4 = arith.constant 0 : index
    %4 = vector.load %arg7[%c0_3, %c0_4] : memref<1x48xf32, #tpu.memory_space<vmem>>, vector<1x48xf32>
    %5 = vector.broadcast %4 : vector<1x48xf32> to vector<8x48xf32>
    %6 = arith.addf %3, %5 : vector<8x48xf32>
    %c0_5 = arith.constant 0 : index
    %c0_6 = arith.constant 0 : index
    %7 = vector.load %arg2[%c0_5, %c0_6] : memref<8x256xf32, #tpu.memory_space<vmem>>, vector<8x256xf32>
    %8 = arith.truncf %7 : vector<8x256xf32> to vector<8x256xbf16>
    %c0_7 = arith.constant 0 : index
    %c0_8 = arith.constant 0 : index
    %9 = vector.load %arg5[%c0_7, %c0_8] : memref<256x48xbf16, #tpu.memory_space<vmem>>, vector<256x48xbf16>
    %cst_9 = arith.constant dense<0.000000e+00> : vector<8x48xf32>
    %10 = tpu.matmul %8, %9, %cst_9 {dimension_numbers = #tpu.dot_dimension_numbers<[1], [0], [0], [1], [0, 0, 1, 1], [], []>} : vector<8x256xbf16>, vector<256x48xbf16>, vector<8x48xf32> -> vector<8x48xf32>
    %c0_10 = arith.constant 0 : index
    %c0_11 = arith.constant 0 : index
    %11 = vector.load %arg8[%c0_10, %c0_11] : memref<1x48xf32, #tpu.memory_space<vmem>>, vector<1x48xf32>
    %12 = vector.broadcast %11 : vector<1x48xf32> to vector<8x48xf32>
    %13 = arith.addf %10, %12 : vector<8x48xf32>
    %c0_12 = arith.constant 0 : index
    %c0_13 = arith.constant 0 : index
    %14 = vector.load %arg3[%c0_12, %c0_13] : memref<8x256xf32, #tpu.memory_space<vmem>>, vector<8x256xf32>
    %15 = arith.truncf %14 : vector<8x256xf32> to vector<8x256xbf16>
    %c0_14 = arith.constant 0 : index
    %c0_15 = arith.constant 0 : index
    %16 = vector.load %arg6[%c0_14, %c0_15] : memref<256x48xbf16, #tpu.memory_space<vmem>>, vector<256x48xbf16>
    %cst_16 = arith.constant dense<0.000000e+00> : vector<8x48xf32>
    %17 = tpu.matmul %15, %16, %cst_16 {dimension_numbers = #tpu.dot_dimension_numbers<[1], [0], [0], [1], [0, 0, 1, 1], [], []>} : vector<8x256xbf16>, vector<256x48xbf16>, vector<8x48xf32> -> vector<8x48xf32>
    %c0_17 = arith.constant 0 : index
    %c0_18 = arith.constant 0 : index
    %18 = vector.load %arg9[%c0_17, %c0_18] : memref<1x48xf32, #tpu.memory_space<vmem>>, vector<1x48xf32>
    %19 = vector.broadcast %18 : vector<1x48xf32> to vector<8x48xf32>
    %20 = arith.addf %17, %19 : vector<8x48xf32>
    %21 = arith.mulf %6, %13 : vector<8x48xf32>
    %22 = arith.mulf %21, %20 : vector<8x48xf32>
    %c0_19 = arith.constant 0 : index
    %c0_20 = arith.constant 0 : index
    %23 = vector.load %arg10[%c0_19, %c0_20] : memref<48x3xf32, #tpu.memory_space<vmem>>, vector<48x3xf32>
    %cst_21 = arith.constant dense<0.000000e+00> : vector<8x3xf32>
    %24 = tpu.matmul %22, %23, %cst_21 {dimension_numbers = #tpu.dot_dimension_numbers<[1], [0], [0], [1], [0, 0, 1, 1], [], []>} : vector<8x48xf32>, vector<48x3xf32>, vector<8x3xf32> -> vector<8x3xf32>
    %c0_22 = arith.constant 0 : index
    %c0_23 = arith.constant 0 : index
    %25 = vector.load %arg11[%c0_22, %c0_23] : memref<1x3xf32, #tpu.memory_space<vmem>>, vector<1x3xf32>
    %26 = vector.broadcast %25 : vector<1x3xf32> to vector<8x3xf32>
    %27 = arith.addf %24, %26 : vector<8x3xf32>
    %c0_24 = arith.constant 0 : index
    %c0_25 = arith.constant 0 : index
    %28 = vector.load %arg12[%c0_24, %c0_25] : memref<8x3xf32, #tpu.memory_space<vmem>>, vector<8x3xf32>
    tpu.vector_store %arg12[%c0_24, %c0_25], %27 {strides = array<i32>} : memref<8x3xf32, #tpu.memory_space<vmem>>, vector<8x3xf32>,
    return
  }
  func.func @transform_0(%arg0: i32) -> (i32, i32) {
    %c0_i32 = arith.constant 0 : i32
    %c0_i32_0 = arith.constant 0 : i32
    return %arg0, %c0_i32 : i32, i32
  }
  func.func @transform_1(%arg0: i32) -> (i32, i32) {
    %c0_i32 = arith.constant 0 : i32
    %c0_i32_0 = arith.constant 0 : i32
    return %arg0, %c0_i32 : i32, i32
  }
  func.func @transform_2(%arg0: i32) -> (i32, i32) {
    %c0_i32 = arith.constant 0 : i32
    %c0_i32_0 = arith.constant 0 : i32
    return %arg0, %c0_i32 : i32, i32
  }
  func.func @transform_3(%arg0: i32) -> (i32, i32) {
    %c0_i32 = arith.constant 0 : i32
    %c0_i32_0 = arith.constant 0 : i32
    %c0_i32_1 = arith.constant 0 : i32
    return %c0_i32, %c0_i32_0 : i32, i32
  }
  func.func @transform_4(%arg0: i32) -> (i32, i32) {
    %c0_i32 = arith.constant 0 : i32
    %c0_i32_0 = arith.constant 0 : i32
    %c0_i32_1 = arith.constant 0 : i32
    return %c0_i32, %c0_i32_0 : i32, i32
  }
  func.func @transform_5(%arg0: i32) -> (i32, i32) {
    %c0_i32 = arith.constant 0 : i32
    %c0_i32_0 = arith.constant 0 : i32
    %c0_i32_1 = arith.constant 0 : i32
    return %c0_i32, %c0_i32_0 : i32, i32
  }
  func.func @transform_6(%arg0: i32) -> (i32, i32) {
    %c0_i32 = arith.constant 0 : i32
    %c0_i32_0 = arith.constant 0 : i32
    %c0_i32_1 = arith.constant 0 : i32
    return %c0_i32, %c0_i32_0 : i32, i32
  }
  func.func @transform_7(%arg0: i32) -> (i32, i32) {
    %c0_i32 = arith.constant 0 : i32
    %c0_i32_0 = arith.constant 0 : i32
    %c0_i32_1 = arith.constant 0 : i32
    return %c0_i32, %c0_i32_0 : i32, i32
  }
  func.func @transform_8(%arg0: i32) -> (i32, i32) {
    %c0_i32 = arith.constant 0 : i32
    %c0_i32_0 = arith.constant 0 : i32
    %c0_i32_1 = arith.constant 0 : i32
    return %c0_i32, %c0_i32_0 : i32, i32
  }
  func.func @transform_9(%arg0: i32) -> (i32, i32) {
    %c0_i32 = arith.constant 0 : i32
    %c0_i32_0 = arith.constant 0 : i32
    %c0_i32_1 = arith.constant 0 : i32
    return %c0_i32, %c0_i32_0 : i32, i32
  }
  func.func @transform_10(%arg0: i32) -> (i32, i32) {
    %c0_i32 = arith.constant 0 : i32
    %c0_i32_0 = arith.constant 0 : i32
    %c0_i32_1 = arith.constant 0 : i32
    return %c0_i32, %c0_i32_0 : i32, i32
  }
  func.func @transform_11(%arg0: i32) -> (i32, i32) {
    %c0_i32 = arith.constant 0 : i32
    %c0_i32_0 = arith.constant 0 : i32
    return %arg0, %c0_i32 : i32, i32
  }
}

</mosaic_0001>

<llo_original>
// kernel: tpu_custom_call.1
$region0: #{tpu_custom_call.1}
  #allocation0 [shape = 'u32[]', space=smem, size = 0x4, offset = 0x4, fixed_abs, tag = 'smem constant byte address 0x4 - core index']
  #allocation1 [shape = 'u32[144,128]{1,0:T(1,128)}', space=vmem, size = 0x12000, scoped, tag = 'internal scratch']
  %s0 = inlined_call_operand.vmem [shape: f32[8,256], index: 0, kind: input, shape index: {}]
  %s1 = inlined_call_operand.vmem [shape: f32[8,256], index: 1, kind: input, shape index: {}]
  %s2 = inlined_call_operand.vmem [shape: f32[8,256], index: 2, kind: input, shape index: {}]
  %s3 = inlined_call_operand.vmem [shape: bf16[256,48], index: 3, kind: input, shape index: {}]
  %s4 = inlined_call_operand.vmem [shape: bf16[256,48], index: 4, kind: input, shape index: {}]
  %s5 = inlined_call_operand.vmem [shape: bf16[256,48], index: 5, kind: input, shape index: {}]
  %s6 = inlined_call_operand.vmem [shape: f32[1,48], index: 6, kind: input, shape index: {}]
  %s7 = inlined_call_operand.vmem [shape: f32[1,48], index: 7, kind: input, shape index: {}]
  %s8 = inlined_call_operand.vmem [shape: f32[1,48], index: 8, kind: input, shape index: {}]
  %s9 = inlined_call_operand.vmem [shape: f32[48,3], index: 9, kind: input, shape index: {}]
  %s10 = inlined_call_operand.vmem [shape: f32[1,3], index: 10, kind: input, shape index: {}]
  %s11 = inlined_call_operand.vmem [shape: f32[8,3], index: 11, kind: output, shape index: {}]
  %s12 = sld [smem:[#allocation0]]
  $region54: #{tpu_custom_call.1} parent=0
    _
  %s14 = ssub.s32 1, %s12
  %s15 = scalar_select 0, %s14, %s12
  // Predicated region
  $region2: #{tpu_custom_call.1} parent=0 // pred_check
    _
  $region3: #{tpu_custom_call.1} parent=0 // pred_check_branch
    %17 = sbr.rel (0) target = $region5
  $region4: #{tpu_custom_call.1} parent=0 // pred_region
    _
  $region5: #{tpu_custom_call.1} parent=0 // pred_fallthru
    _
  // Predicated region
  $region6: #{tpu_custom_call.1} parent=0 // pred_check
    _
  $region7: #{tpu_custom_call.1} parent=0 // pred_check_branch
    %19 = sbr.rel (0) target = $region9
  $region8: #{tpu_custom_call.1} parent=0 // pred_region
    _
  $region9: #{tpu_custom_call.1} parent=0 // pred_fallthru
    _
  // Predicated region
  $region10: #{tpu_custom_call.1} parent=0 // pred_check
    _
  $region11: #{tpu_custom_call.1} parent=0 // pred_check_branch
    %21 = sbr.rel (0) target = $region13
  $region12: #{tpu_custom_call.1} parent=0 // pred_region
    _
  $region13: #{tpu_custom_call.1} parent=0 // pred_fallthru
    _
  // Predicated region
  $region14: #{tpu_custom_call.1} parent=0 // pred_check
    _
  $region15: #{tpu_custom_call.1} parent=0 // pred_check_branch
    %23 = sbr.rel (0) target = $region17
  $region16: #{tpu_custom_call.1} parent=0 // pred_region
    _
  $region17: #{tpu_custom_call.1} parent=0 // pred_fallthru
    _
  // Predicated region
  $region18: #{tpu_custom_call.1} parent=0 // pred_check
    _
  $region19: #{tpu_custom_call.1} parent=0 // pred_check_branch
    %25 = sbr.rel (0) target = $region21
  $region20: #{tpu_custom_call.1} parent=0 // pred_region
    _
  $region21: #{tpu_custom_call.1} parent=0 // pred_fallthru
    _
  // Predicated region
  $region22: #{tpu_custom_call.1} parent=0 // pred_check
    _
  $region23: #{tpu_custom_call.1} parent=0 // pred_check_branch
    %27 = sbr.rel (0) target = $region25
  $region24: #{tpu_custom_call.1} parent=0 // pred_region
    _
  $region25: #{tpu_custom_call.1} parent=0 // pred_fallthru
    _
  // Predicated region
  $region26: #{tpu_custom_call.1} parent=0 // pred_check
    _
  $region27: #{tpu_custom_call.1} parent=0 // pred_check_branch
    %29 = sbr.rel (0) target = $region29
  $region28: #{tpu_custom_call.1} parent=0 // pred_region
    _
  $region29: #{tpu_custom_call.1} parent=0 // pred_fallthru
    _
  // Predicated region
  $region30: #{tpu_custom_call.1} parent=0 // pred_check
    _
  $region31: #{tpu_custom_call.1} parent=0 // pred_check_branch
    %31 = sbr.rel (0) target = $region33
  $region32: #{tpu_custom_call.1} parent=0 // pred_region
    _
  $region33: #{tpu_custom_call.1} parent=0 // pred_fallthru
    _
  // Predicated region
  $region34: #{tpu_custom_call.1} parent=0 // pred_check
    _
  $region35: #{tpu_custom_call.1} parent=0 // pred_check_branch
    %33 = sbr.rel (0) target = $region37
  $region36: #{tpu_custom_call.1} parent=0 // pred_region
    _
  $region37: #{tpu_custom_call.1} parent=0 // pred_fallthru
    _
  // Predicated region
  $region38: #{tpu_custom_call.1} parent=0 // pred_check
    _
  $region39: #{tpu_custom_call.1} parent=0 // pred_check_branch
    %35 = sbr.rel (0) target = $region41
  $region40: #{tpu_custom_call.1} parent=0 // pred_region
    _
  $region41: #{tpu_custom_call.1} parent=0 // pred_fallthru
    _
  // Predicated region
  $region42: #{tpu_custom_call.1} parent=0 // pred_check
    _
  $region43: #{tpu_custom_call.1} parent=0 // pred_check_branch
    %37 = sbr.rel (0) target = $region45
  $region44: #{tpu_custom_call.1} parent=0 // pred_region
    _
  $region45: #{tpu_custom_call.1} parent=0 // pred_fallthru
    _
  %v39 = vld [vmem:[%s0] sm:$0xff]
  %v40 = vld [vmem:[%s0 + $0x8] sm:$0xff]
  %v41 = vpack.c.bf16 %v39, %v39
  %v42 = vpack.c.bf16 %v40, %v40
  %v43 = vld [vmem:[%s3] sm:$0xf]
  %v44 = vld [vmem:[%s3 + $0x4] sm:$0xf]
  %v45 = vld [vmem:[%s3 + $0x8] sm:$0xf]
  %v46 = vld [vmem:[%s3 + $0xc] sm:$0xf]
  %v47 = vld [vmem:[%s3 + $0x10] sm:$0xf]
  %v48 = vld [vmem:[%s3 + $0x14] sm:$0xf]
  %v49 = vld [vmem:[%s3 + $0x18] sm:$0xf]
  %v50 = vld [vmem:[%s3 + $0x1c] sm:$0xf]
  %v51 = vld [vmem:[%s3 + $0x20] sm:$0xf]
  %v52 = vld [vmem:[%s3 + $0x24] sm:$0xf]
  %v53 = vld [vmem:[%s3 + $0x28] sm:$0xf]
  %v54 = vld [vmem:[%s3 + $0x2c] sm:$0xf]
  %v55 = vld [vmem:[%s3 + $0x30] sm:$0xf]
  %v56 = vld [vmem:[%s3 + $0x34] sm:$0xf]
  %v57 = vld [vmem:[%s3 + $0x38] sm:$0xf]
  %v58 = vld [vmem:[%s3 + $0x3c] sm:$0xf]
  %v59 = vld [vmem:[%s3 + $0x40] sm:$0xf]
  %v60 = vld [vmem:[%s3 + $0x44] sm:$0xf]
  %v61 = vld [vmem:[%s3 + $0x48] sm:$0xf]
  %v62 = vld [vmem:[%s3 + $0x4c] sm:$0xf]
  %v63 = vld [vmem:[%s3 + $0x50] sm:$0xf]
  %v64 = vld [vmem:[%s3 + $0x54] sm:$0xf]
  %v65 = vld [vmem:[%s3 + $0x58] sm:$0xf]
  %v66 = vld [vmem:[%s3 + $0x5c] sm:$0xf]
  %v67 = vld [vmem:[%s3 + $0x60] sm:$0xf]
  %v68 = vld [vmem:[%s3 + $0x64] sm:$0xf]
  %v69 = vld [vmem:[%s3 + $0x68] sm:$0xf]
  %v70 = vld [vmem:[%s3 + $0x6c] sm:$0xf]
  %v71 = vld [vmem:[%s3 + $0x70] sm:$0xf]
  %v72 = vld [vmem:[%s3 + $0x74] sm:$0xf]
  %v73 = vld [vmem:[%s3 + $0x78] sm:$0xf]
  %v74 = vld [vmem:[%s3 + $0x7c] sm:$0xf]
  %v75 = vld [vmem:[%s6] sm:$0x1]
  %v77 = vlaneseq
  %v78 = vshrl.u32 %v77, 7
  %v79 = vsub.s32 0, %v78
  %v80 = vrot.slane %v75, %v79
  %v114 = vunpack.c.l.b16 %v43
  %v115 = vunpack.c.l.b16 %v44
  %v116 = vunpack.c.l.b16 %v45
  %v117 = vunpack.c.l.b16 %v46
  %v118 = vunpack.c.l.b16 %v47
  %v119 = vunpack.c.l.b16 %v48
  %v120 = vunpack.c.l.b16 %v49
  %v121 = vunpack.c.l.b16 %v50
  %v122 = vunpack.c.l.b16 %v51
  %v123 = vunpack.c.l.b16 %v52
  %v124 = vunpack.c.l.b16 %v53
  %v125 = vunpack.c.l.b16 %v54
  %v126 = vunpack.c.l.b16 %v55
  %v127 = vunpack.c.l.b16 %v56
  %v128 = vunpack.c.l.b16 %v57
  %v129 = vunpack.c.l.b16 %v58
  %v130 = vunpack.c.l.b16 %v59
  %v131 = vunpack.c.l.b16 %v60
  %v132 = vunpack.c.l.b16 %v61
  %v133 = vunpack.c.l.b16 %v62
  %v134 = vunpack.c.l.b16 %v63
  %v135 = vunpack.c.l.b16 %v64
  %v136 = vunpack.c.l.b16 %v65
  %v137 = vunpack.c.l.b16 %v66
  %v138 = vunpack.c.l.b16 %v67
  %v139 = vunpack.c.l.b16 %v68
  %v140 = vunpack.c.l.b16 %v69
  %v141 = vunpack.c.l.b16 %v70
  %v142 = vunpack.c.l.b16 %v71
  %v143 = vunpack.c.l.b16 %v72
  %v144 = vunpack.c.l.b16 %v73
  %v145 = vunpack.c.l.b16 %v74
  %v146 = vpack.c.b16 %v115, %v114
  %v147 = vpack.c.b16 %v117, %v116
  %v148 = vpack.c.b16 %v119, %v118
  %v149 = vpack.c.b16 %v121, %v120
  %v150 = vpack.c.b16 %v123, %v122
  %v151 = vpack.c.b16 %v125, %v124
  %v152 = vpack.c.b16 %v127, %v126
  %v153 = vpack.c.b16 %v129, %v128
  %v154 = vpack.c.b16 %v131, %v130
  %v155 = vpack.c.b16 %v133, %v132
  %v156 = vpack.c.b16 %v135, %v134
  %v157 = vpack.c.b16 %v137, %v136
  %v158 = vpack.c.b16 %v139, %v138
  %v159 = vpack.c.b16 %v141, %v140
  %v160 = vpack.c.b16 %v143, %v142
  %v161 = vpack.c.b16 %v145, %v144
  %178 = vmatprep.subr.bf16.mxu0 0
  %179 = vmatpush1.bf16.msra.mxu0 %v146
  %180 = vmatprep.subr.bf16.mxu0 0
  %181 = vmatpush1.bf16.msra.mxu0 %v147
  %182 = vmatprep.subr.bf16.mxu0 0
  %183 = vmatpush1.bf16.msra.mxu0 %v148
  %184 = vmatprep.subr.bf16.mxu0 0
  %185 = vmatpush1.bf16.msra.mxu0 %v149
  %186 = vmatprep.subr.bf16.mxu0 0
  %187 = vmatpush1.bf16.msra.mxu0 %v150
  %188 = vmatprep.subr.bf16.mxu0 0
  %189 = vmatpush1.bf16.msra.mxu0 %v151
  %190 = vmatprep.subr.bf16.mxu0 0
  %191 = vmatpush1.bf16.msra.mxu0 %v152
  %192 = vmatprep.subr.bf16.mxu0 0
  %193 = vmatpush1.bf16.msra.mxu0 %v153
  %194 = vmatprep.subr.bf16.mxu0 0
  %195 = vmatpush1.bf16.msra.mxu0 %v154
  %196 = vmatprep.subr.bf16.mxu0 0
  %197 = vmatpush1.bf16.msra.mxu0 %v155
  %198 = vmatprep.subr.bf16.mxu0 0
  %199 = vmatpush1.bf16.msra.mxu0 %v156
  %200 = vmatprep.subr.bf16.mxu0 0
  %201 = vmatpush1.bf16.msra.mxu0 %v157
  %202 = vmatprep.subr.bf16.mxu0 0
  %203 = vmatpush1.bf16.msra.mxu0 %v158
  %204 = vmatprep.subr.bf16.mxu0 0
  %205 = vmatpush1.bf16.msra.mxu0 %v159
  %206 = vmatprep.subr.bf16.mxu0 0
  %207 = vmatpush1.bf16.msra.mxu0 %v160
  %208 = vmatprep.subr.bf16.mxu0 0
  %209 = vmatpush1.bf16.msra.mxu0 %v161
  %210 = vmatprep.mubr.bf16.mxu0 %v42
  %211 = vmatmul.mubr.bf16.gmra.mrb[0].mxu0 %v41
  %v212 = vpop.f32.mrb[0].mxu0
  %v213 = vadd.f32 %v80, %v212
  %v214 = vpop.f32.mrb[0].mxu0
  %v215 = vpop.f32.mrb[0].mxu0
  %v216 = vpop.f32.mrb[0].mxu0
  %217 = vdwg.mxu0
  %v218 = vld [vmem:[%s1] sm:$0xff]
  %v219 = vld [vmem:[%s1 + $0x8] sm:$0xff]
  %v220 = vpack.c.bf16 %v218, %v218
  %v221 = vpack.c.bf16 %v219, %v219
  %v222 = vld [vmem:[%s4] sm:$0xf]
  %v223 = vld [vmem:[%s4 + $0x4] sm:$0xf]
  %v224 = vld [vmem:[%s4 + $0x8] sm:$0xf]
  %v225 = vld [vmem:[%s4 + $0xc] sm:$0xf]
  %v226 = vld [vmem:[%s4 + $0x10] sm:$0xf]
  %v227 = vld [vmem:[%s4 + $0x14] sm:$0xf]
  %v228 = vld [vmem:[%s4 + $0x18] sm:$0xf]
  %v229 = vld [vmem:[%s4 + $0x1c] sm:$0xf]
  %v230 = vld [vmem:[%s4 + $0x20] sm:$0xf]
  %v231 = vld [vmem:[%s4 + $0x24] sm:$0xf]
  %v232 = vld [vmem:[%s4 + $0x28] sm:$0xf]
  %v233 = vld [vmem:[%s4 + $0x2c] sm:$0xf]
  %v234 = vld [vmem:[%s4 + $0x30] sm:$0xf]
  %v235 = vld [vmem:[%s4 + $0x34] sm:$0xf]
  %v236 = vld [vmem:[%s4 + $0x38] sm:$0xf]
  %v237 = vld [vmem:[%s4 + $0x3c] sm:$0xf]
  %v238 = vld [vmem:[%s4 + $0x40] sm:$0xf]
  %v239 = vld [vmem:[%s4 + $0x44] sm:$0xf]
  %v240 = vld [vmem:[%s4 + $0x48] sm:$0xf]
  %v241 = vld [vmem:[%s4 + $0x4c] sm:$0xf]
  %v242 = vld [vmem:[%s4 + $0x50] sm:$0xf]
  %v243 = vld [vmem:[%s4 + $0x54] sm:$0xf]
  %v244 = vld [vmem:[%s4 + $0x58] sm:$0xf]
  %v245 = vld [vmem:[%s4 + $0x5c] sm:$0xf]
  %v246 = vld [vmem:[%s4 + $0x60] sm:$0xf]
  %v247 = vld [vmem:[%s4 + $0x64] sm:$0xf]
  %v248 = vld [vmem:[%s4 + $0x68] sm:$0xf]
  %v249 = vld [vmem:[%s4 + $0x6c] sm:$0xf]
  %v250 = vld [vmem:[%s4 + $0x70] sm:$0xf]
  %v251 = vld [vmem:[%s4 + $0x74] sm:$0xf]
  %v252 = vld [vmem:[%s4 + $0x78] sm:$0xf]
  %v253 = vld [vmem:[%s4 + $0x7c] sm:$0xf]
  %v254 = vld [vmem:[%s7] sm:$0x1]
  %v256 = vlaneseq
  %v257 = vshrl.u32 %v256, 7
  %v258 = vsub.s32 0, %v257
  %v259 = vrot.slane %v254, %v258
  %v293 = vunpack.c.l.b16 %v222
  %v294 = vunpack.c.l.b16 %v223
  %v295 = vunpack.c.l.b16 %v224
  %v296 = vunpack.c.l.b16 %v225
  %v297 = vunpack.c.l.b16 %v226
  %v298 = vunpack.c.l.b16 %v227
  %v299 = vunpack.c.l.b16 %v228
  %v300 = vunpack.c.l.b16 %v229
  %v301 = vunpack.c.l.b16 %v230
  %v302 = vunpack.c.l.b16 %v231
  %v303 = vunpack.c.l.b16 %v232
  %v304 = vunpack.c.l.b16 %v233
  %v305 = vunpack.c.l.b16 %v234
  %v306 = vunpack.c.l.b16 %v235
  %v307 = vunpack.c.l.b16 %v236
  %v308 = vunpack.c.l.b16 %v237
  %v309 = vunpack.c.l.b16 %v238
  %v310 = vunpack.c.l.b16 %v239
  %v311 = vunpack.c.l.b16 %v240
  %v312 = vunpack.c.l.b16 %v241
  %v313 = vunpack.c.l.b16 %v242
  %v314 = vunpack.c.l.b16 %v243
  %v315 = vunpack.c.l.b16 %v244
  %v316 = vunpack.c.l.b16 %v245
  %v317 = vunpack.c.l.b16 %v246
  %v318 = vunpack.c.l.b16 %v247
  %v319 = vunpack.c.l.b16 %v248
  %v320 = vunpack.c.l.b16 %v249
  %v321 = vunpack.c.l.b16 %v250
  %v322 = vunpack.c.l.b16 %v251
  %v323 = vunpack.c.l.b16 %v252
  %v324 = vunpack.c.l.b16 %v253
  %v325 = vpack.c.b16 %v294, %v293
  %v326 = vpack.c.b16 %v296, %v295
  %v327 = vpack.c.b16 %v298, %v297
  %v328 = vpack.c.b16 %v300, %v299
  %v329 = vpack.c.b16 %v302, %v301
  %v330 = vpack.c.b16 %v304, %v303
  %v331 = vpack.c.b16 %v306, %v305
  %v332 = vpack.c.b16 %v308, %v307
  %v333 = vpack.c.b16 %v310, %v309
  %v334 = vpack.c.b16 %v312, %v311
  %v335 = vpack.c.b16 %v314, %v313
  %v336 = vpack.c.b16 %v316, %v315
  %v337 = vpack.c.b16 %v318, %v317
  %v338 = vpack.c.b16 %v320, %v319
  %v339 = vpack.c.b16 %v322, %v321
  %v340 = vpack.c.b16 %v324, %v323
  %357 = vmatprep.subr.bf16.mxu0 0
  %358 = vmatpush1.bf16.msra.mxu0 %v325
  %359 = vmatprep.subr.bf16.mxu0 0
  %360 = vmatpush1.bf16.msra.mxu0 %v326
  %361 = vmatprep.subr.bf16.mxu0 0
  %362 = vmatpush1.bf16.msra.mxu0 %v327
  %363 = vmatprep.subr.bf16.mxu0 0
  %364 = vmatpush1.bf16.msra.mxu0 %v328
  %365 = vmatprep.subr.bf16.mxu0 0
  %366 = vmatpush1.bf16.msra.mxu0 %v329
  %367 = vmatprep.subr.bf16.mxu0 0
  %368 = vmatpush1.bf16.msra.mxu0 %v330
  %369 = vmatprep.subr.bf16.mxu0 0
  %370 = vmatpush1.bf16.msra.mxu0 %v331
  %371 = vmatprep.subr.bf16.mxu0 0
  %372 = vmatpush1.bf16.msra.mxu0 %v332
  %373 = vmatprep.subr.bf16.mxu0 0
  %374 = vmatpush1.bf16.msra.mxu0 %v333
  %375 = vmatprep.subr.bf16.mxu0 0
  %376 = vmatpush1.bf16.msra.mxu0 %v334
  %377 = vmatprep.subr.bf16.mxu0 0
  %378 = vmatpush1.bf16.msra.mxu0 %v335
  %379 = vmatprep.subr.bf16.mxu0 0
  %380 = vmatpush1.bf16.msra.mxu0 %v336
  %381 = vmatprep.subr.bf16.mxu0 0
  %382 = vmatpush1.bf16.msra.mxu0 %v337
  %383 = vmatprep.subr.bf16.mxu0 0
  %384 = vmatpush1.bf16.msra.mxu0 %v338
  %385 = vmatprep.subr.bf16.mxu0 0
  %386 = vmatpush1.bf16.msra.mxu0 %v339
  %387 = vmatprep.subr.bf16.mxu0 0
  %388 = vmatpush1.bf16.msra.mxu0 %v340
  %389 = vmatprep.mubr.bf16.mxu0 %v221
  %390 = vmatmul.mubr.bf16.gmra.mrb[0].mxu0 %v220
  %v391 = vpop.f32.mrb[0].mxu0
  %v392 = vadd.f32 %v259, %v391
  %v393 = vpop.f32.mrb[0].mxu0
  %v394 = vpop.f32.mrb[0].mxu0
  %v395 = vpop.f32.mrb[0].mxu0
  %396 = vdwg.mxu0
  %v397 = vld [vmem:[%s2] sm:$0xff]
  %v398 = vld [vmem:[%s2 + $0x8] sm:$0xff]
  %v399 = vpack.c.bf16 %v397, %v397
  %v400 = vpack.c.bf16 %v398, %v398
  %v401 = vld [vmem:[%s5] sm:$0xf]
  %v402 = vld [vmem:[%s5 + $0x4] sm:$0xf]
  %v403 = vld [vmem:[%s5 + $0x8] sm:$0xf]
  %v404 = vld [vmem:[%s5 + $0xc] sm:$0xf]
  %v405 = vld [vmem:[%s5 + $0x10] sm:$0xf]
  %v406 = vld [vmem:[%s5 + $0x14] sm:$0xf]
  %v407 = vld [vmem:[%s5 + $0x18] sm:$0xf]
  %v408 = vld [vmem:[%s5 + $0x1c] sm:$0xf]
  %v409 = vld [vmem:[%s5 + $0x20] sm:$0xf]
  %v410 = vld [vmem:[%s5 + $0x24] sm:$0xf]
  %v411 = vld [vmem:[%s5 + $0x28] sm:$0xf]
  %v412 = vld [vmem:[%s5 + $0x2c] sm:$0xf]
  %v413 = vld [vmem:[%s5 + $0x30] sm:$0xf]
  %v414 = vld [vmem:[%s5 + $0x34] sm:$0xf]
  %v415 = vld [vmem:[%s5 + $0x38] sm:$0xf]
  %v416 = vld [vmem:[%s5 + $0x3c] sm:$0xf]
  %v417 = vld [vmem:[%s5 + $0x40] sm:$0xf]
  %v418 = vld [vmem:[%s5 + $0x44] sm:$0xf]
  %v419 = vld [vmem:[%s5 + $0x48] sm:$0xf]
  %v420 = vld [vmem:[%s5 + $0x4c] sm:$0xf]
  %v421 = vld [vmem:[%s5 + $0x50] sm:$0xf]
  %v422 = vld [vmem:[%s5 + $0x54] sm:$0xf]
  %v423 = vld [vmem:[%s5 + $0x58] sm:$0xf]
  %v424 = vld [vmem:[%s5 + $0x5c] sm:$0xf]
  %v425 = vld [vmem:[%s5 + $0x60] sm:$0xf]
  %v426 = vld [vmem:[%s5 + $0x64] sm:$0xf]
  %v427 = vld [vmem:[%s5 + $0x68] sm:$0xf]
  %v428 = vld [vmem:[%s5 + $0x6c] sm:$0xf]
  %v429 = vld [vmem:[%s5 + $0x70] sm:$0xf]
  %v430 = vld [vmem:[%s5 + $0x74] sm:$0xf]
  %v431 = vld [vmem:[%s5 + $0x78] sm:$0xf]
  %v432 = vld [vmem:[%s5 + $0x7c] sm:$0xf]
  %v433 = vld [vmem:[%s8] sm:$0x1]
  %v435 = vlaneseq
  %v436 = vshrl.u32 %v435, 7
  %v437 = vsub.s32 0, %v436
  %v438 = vrot.slane %v433, %v437
  %v472 = vunpack.c.l.b16 %v401
  %v473 = vunpack.c.l.b16 %v402
  %v474 = vunpack.c.l.b16 %v403
  %v475 = vunpack.c.l.b16 %v404
  %v476 = vunpack.c.l.b16 %v405
  %v477 = vunpack.c.l.b16 %v406
  %v478 = vunpack.c.l.b16 %v407
  %v479 = vunpack.c.l.b16 %v408
  %v480 = vunpack.c.l.b16 %v409
  %v481 = vunpack.c.l.b16 %v410
  %v482 = vunpack.c.l.b16 %v411
  %v483 = vunpack.c.l.b16 %v412
  %v484 = vunpack.c.l.b16 %v413
  %v485 = vunpack.c.l.b16 %v414
  %v486 = vunpack.c.l.b16 %v415
  %v487 = vunpack.c.l.b16 %v416
  %v488 = vunpack.c.l.b16 %v417
  %v489 = vunpack.c.l.b16 %v418
  %v490 = vunpack.c.l.b16 %v419
  %v491 = vunpack.c.l.b16 %v420
  %v492 = vunpack.c.l.b16 %v421
  %v493 = vunpack.c.l.b16 %v422
  %v494 = vunpack.c.l.b16 %v423
  %v495 = vunpack.c.l.b16 %v424
  %v496 = vunpack.c.l.b16 %v425
  %v497 = vunpack.c.l.b16 %v426
  %v498 = vunpack.c.l.b16 %v427
  %v499 = vunpack.c.l.b16 %v428
  %v500 = vunpack.c.l.b16 %v429
  %v501 = vunpack.c.l.b16 %v430
  %v502 = vunpack.c.l.b16 %v431
  %v503 = vunpack.c.l.b16 %v432
  %v504 = vpack.c.b16 %v473, %v472
  %v505 = vpack.c.b16 %v475, %v474
  %v506 = vpack.c.b16 %v477, %v476
  %v507 = vpack.c.b16 %v479, %v478
  %v508 = vpack.c.b16 %v481, %v480
  %v509 = vpack.c.b16 %v483, %v482
  %v510 = vpack.c.b16 %v485, %v484
  %v511 = vpack.c.b16 %v487, %v486
  %v512 = vpack.c.b16 %v489, %v488
  %v513 = vpack.c.b16 %v491, %v490
  %v514 = vpack.c.b16 %v493, %v492
  %v515 = vpack.c.b16 %v495, %v494
  %v516 = vpack.c.b16 %v497, %v496
  %v517 = vpack.c.b16 %v499, %v498
  %v518 = vpack.c.b16 %v501, %v500
  %v519 = vpack.c.b16 %v503, %v502
  %536 = vmatprep.subr.bf16.mxu0 0
  %537 = vmatpush1.bf16.msra.mxu0 %v504
  %538 = vmatprep.subr.bf16.mxu0 0
  %539 = vmatpush1.bf16.msra.mxu0 %v505
  %540 = vmatprep.subr.bf16.mxu0 0
  %541 = vmatpush1.bf16.msra.mxu0 %v506
  %542 = vmatprep.subr.bf16.mxu0 0
  %543 = vmatpush1.bf16.msra.mxu0 %v507
  %544 = vmatprep.subr.bf16.mxu0 0
  %545 = vmatpush1.bf16.msra.mxu0 %v508
  %546 = vmatprep.subr.bf16.mxu0 0
  %547 = vmatpush1.bf16.msra.mxu0 %v509
  %548 = vmatprep.subr.bf16.mxu0 0
  %549 = vmatpush1.bf16.msra.mxu0 %v510
  %550 = vmatprep.subr.bf16.mxu0 0
  %551 = vmatpush1.bf16.msra.mxu0 %v511
  %552 = vmatprep.subr.bf16.mxu0 0
  %553 = vmatpush1.bf16.msra.mxu0 %v512
  %554 = vmatprep.subr.bf16.mxu0 0
  %555 = vmatpush1.bf16.msra.mxu0 %v513
  %556 = vmatprep.subr.bf16.mxu0 0
  %557 = vmatpush1.bf16.msra.mxu0 %v514
  %558 = vmatprep.subr.bf16.mxu0 0
  %559 = vmatpush1.bf16.msra.mxu0 %v515
  %560 = vmatprep.subr.bf16.mxu0 0
  %561 = vmatpush1.bf16.msra.mxu0 %v516
  %562 = vmatprep.subr.bf16.mxu0 0
  %563 = vmatpush1.bf16.msra.mxu0 %v517
  %564 = vmatprep.subr.bf16.mxu0 0
  %565 = vmatpush1.bf16.msra.mxu0 %v518
  %566 = vmatprep.subr.bf16.mxu0 0
  %567 = vmatpush1.bf16.msra.mxu0 %v519
  %568 = vmatprep.mubr.bf16.mxu0 %v400
  %569 = vmatmul.mubr.bf16.gmra.mrb[0].mxu0 %v399
  %v570 = vpop.f32.mrb[0].mxu0
  %v571 = vadd.f32 %v438, %v570
  %v572 = vpop.f32.mrb[0].mxu0
  %v573 = vpop.f32.mrb[0].mxu0
  %v574 = vpop.f32.mrb[0].mxu0
  %575 = vdwg.mxu0
  %v576 = vmul.f32 %v213, %v392
  %v577 = vmul.f32 %v576, %v571
  %v578 = vld [vmem:[%s9] sm:$0xff]
  %v579 = vld [vmem:[%s9 + $0x8] sm:$0xff]
  %v580 = vld [vmem:[%s9 + $0x10] sm:$0xff]
  %v581 = vld [vmem:[%s9 + $0x18] sm:$0xff]
  %v582 = vld [vmem:[%s9 + $0x20] sm:$0xff]
  %v583 = vld [vmem:[%s9 + $0x28] sm:$0xff]
  %v584 = vld [vmem:[%s10] sm:$0x1]
  %v586 = vlaneseq
  %v587 = vshrl.u32 %v586, 7
  %v588 = vsub.s32 0, %v587
  %v589 = vrot.slane %v584, %v588
  %vm591 = vcmask 392192
  %v593 = vsel %vm591, %v577, 0
  %595 = vmatprep.subr.mxu0 0.0
  %596 = vmatpush1.msra.mxu0 %v578
  %597 = vmatprep.subr.mxu0 0.0
  %598 = vmatpush1.msra.mxu0 %v579
  %599 = vmatprep.subr.mxu0 0.0
  %600 = vmatpush1.msra.mxu0 %v580
  %601 = vmatprep.subr.mxu0 0.0
  %602 = vmatpush1.msra.mxu0 %v581
  %603 = vmatprep.subr.mxu0 0.0
  %604 = vmatpush1.msra.mxu0 %v582
  %605 = vmatprep.subr.mxu0 0.0
  %606 = vmatpush1.msra.mxu0 %v583
  %607 = vmatprep.subr.mxu0 0.0
  %608 = vmatpush1.msra.mxu0 0.0
  %609 = vmatprep.subr.mxu0 0.0
  %610 = vmatpush1.msra.mxu0 0.0
  %611 = vmatprep.subr.mxu0 0.0
  %612 = vmatpush1.msra.mxu0 0.0
  %613 = vmatprep.subr.mxu0 0.0
  %614 = vmatpush1.msra.mxu0 0.0
  %615 = vmatprep.subr.mxu0 0.0
  %616 = vmatpush1.msra.mxu0 0.0
  %617 = vmatprep.subr.mxu0 0.0
  %618 = vmatpush1.msra.mxu0 0.0
  %619 = vmatprep.subr.mxu0 0.0
  %620 = vmatpush1.msra.mxu0 0.0
  %621 = vmatprep.subr.mxu0 0.0
  %622 = vmatpush1.msra.mxu0 0.0
  %623 = vmatprep.subr.mxu0 0.0
  %624 = vmatpush1.msra.mxu0 0.0
  %625 = vmatprep.subr.mxu0 0.0
  %626 = vmatpush1.msra.mxu0 0.0
  %627 = vmatprep.subr.mxu0 0.0
  %628 = vmatpush1.msra.mxu0 0.0
  %629 = vmatprep.subr.mxu0 0.0
  %630 = vmatpush1.msra.mxu0 0.0
  %631 = vmatprep.subr.mxu0 0.0
  %632 = vmatpush1.msra.mxu0 0.0
  %633 = vmatprep.subr.mxu0 0.0
  %634 = vmatpush1.msra.mxu0 0.0
  %635 = vmatprep.subr.mxu0 0.0
  %636 = vmatpush1.msra.mxu0 0.0
  %637 = vmatprep.subr.mxu0 0.0
  %638 = vmatpush1.msra.mxu0 0.0
  %639 = vmatprep.subr.mxu0 0.0
  %640 = vmatpush1.msra.mxu0 0.0
  %641 = vmatprep.subr.mxu0 0.0
  %642 = vmatpush1.msra.mxu0 0.0
  %643 = vmatprep.subr.mxu0 0.0
  %644 = vmatpush1.msra.mxu0 0.0
  %645 = vmatprep.subr.mxu0 0.0
  %646 = vmatpush1.msra.mxu0 0.0
  %647 = vmatprep.subr.mxu0 0.0
  %648 = vmatpush1.msra.mxu0 0.0
  %649 = vmatprep.subr.mxu0 0.0
  %650 = vmatpush1.msra.mxu0 0.0
  %651 = vmatprep.subr.mxu0 0.0
  %652 = vmatpush1.msra.mxu0 0.0
  %653 = vmatprep.subr.mxu0 0.0
  %654 = vmatpush1.msra.mxu0 0.0
  %655 = vmatprep.subr.mxu0 0.0
  %656 = vmatpush1.msra.mxu0 0.0
  %657 = vmatprep.subr.mxu0 0.0
  %658 = vmatpush1.msra.mxu0 0.0
  %659 = vmatprep.mubr.f32.mxu0 0.0
  %660 = vmatmul.mubr.f32.gmra.mrb[0].mxu0 %v593
  %v661 = vpop.f32.mrb[0].mxu0
  %v662 = vadd.f32 %v589, %v661
  %v663 = vpop.f32.mrb[0].mxu0
  %664 = vdwg.mxu0
  %vm665 = vcmask 23552
  %666 = vst.msk [vmem:[%s11] sm:$0xff] %vm665, %v662
  // Predicated region
  $region46: #{tpu_custom_call.1} parent=0 // pred_check
    _
  $region47: #{tpu_custom_call.1} parent=0 // pred_check_branch
    %668 = sbr.rel (0) target = $region49
  $region48: #{tpu_custom_call.1} parent=0 // pred_region
    _
  $region49: #{tpu_custom_call.1} parent=0 // pred_fallthru
    _
  // Predicated region
  $region50: #{tpu_custom_call.1} parent=0 // pred_check
    _
  $region51: #{tpu_custom_call.1} parent=0 // pred_check_branch
    %670 = sbr.rel (0) target = $region53
  $region52: #{tpu_custom_call.1} parent=0 // pred_region
    _
  $region53: #{tpu_custom_call.1} parent=0 // pred_fallthru
    _

</llo_original>
